<compile_context>
chip_gen: v7x
topology: tpu7x:2x2x1
jax: 0.10.0
libtpu: 0.0.40
codegen_flags: <defaults>
</compile_context>

<pallas_src>
import jax
import jax.numpy as jnp
from jax.experimental import pallas as pl
from jax.experimental.pallas import tpu as pltpu


def _sobel_kernel(x_ref, o_ref):
    # x_ref: (TILE_N, H, Wp) block; o_ref: (TILE_N, H-2, Wp) block.
    # Output columns >= W-2 contain wrap-around garbage and are sliced off by the
    # wrapper (keeps every store a full, unmasked lane-dense vst).
    Ho = o_ref.shape[1]
    Wp = x_ref.shape[2]

    top = x_ref[:, 0:Ho, :]          # rows r
    mid = x_ref[:, 1:Ho + 1, :]      # rows r+1
    bot = x_ref[:, 2:Ho + 2, :]      # rows r+2

    # Vertical (separable) pass on full-width rows.
    a = top + 2.0 * mid + bot        # smoothing column of kernel_x
    d = bot - top                    # difference column of kernel_y

    # Horizontal pass via lane rotations (roll by Wp-k == shift left by k columns).
    a2 = pltpu.roll(a, shift=Wp - 2, axis=2)   # a2[..., c] = a[..., c+2 (mod Wp)]
    d1 = pltpu.roll(d, shift=Wp - 1, axis=2)   # d1[..., c] = d[..., c+1 (mod Wp)]
    d2 = pltpu.roll(d, shift=Wp - 2, axis=2)   # d2[..., c] = d[..., c+2 (mod Wp)]

    gx = a2 - a                      # kernel_x = [[-1,0,1],[-2,0,2],[-1,0,1]]
    gy = d + 2.0 * d1 + d2           # kernel_y = [[-1,-2,-1],[0,0,0],[1,2,1]]

    o_ref[...] = (jnp.abs(gx) + jnp.abs(gy)).astype(o_ref.dtype)


def _choose_tile_n(N, H, Wp, itemsize=4, budget_bytes=1 << 20):
    """Images per grid step: large enough to amortize ~0.35us/step grid overhead,
    small enough that the double-buffered I/O blocks + elementwise temporaries fit
    VMEM comfortably, capped so the grid keeps >= 2 steps for megacore sharding."""
    per_img = H * Wp * itemsize
    t = max(1, budget_bytes // per_img)
    t = min(t, N)
    if N >= 2:
        t = min(t, -(-N // 2))       # ceil(N/2): keep at least 2 grid steps
    return max(1, int(t))


def gradient_net(x):
    """x: (N, 1, H, W) float32  ->  (N, 1, H-2, W-2) float32."""
    N, C, H, W = x.shape
    assert C == 1, "Gradient_Net conv weights are (1,1,3,3): input must have 1 channel"
    assert H >= 3 and W >= 3, "need at least a 3x3 spatial window"
    Ho, Wo = H - 2, W - 2

    # Lane-dense width: next multiple of 128.
    Wp = ((W + 127) // 128) * 128
    tile_n = _choose_tile_n(N, H, Wp, jnp.dtype(x.dtype).itemsize)
    N_pad = -(-N // tile_n) * tile_n

    x3 = x.reshape(N, H, W)
    pad_n, pad_w = N_pad - N, Wp - W
    if pad_n or pad_w:
        x3 = jnp.pad(x3, ((0, pad_n), (0, 0), (0, pad_w)))

    out = pl.pallas_call(
        _sobel_kernel,
        out_shape=jax.ShapeDtypeStruct((N_pad, Ho, Wp), x.dtype),
        grid_spec=pltpu.PrefetchScalarGridSpec(
            num_scalar_prefetch=0,
            grid=(N_pad // tile_n,),
            in_specs=[pl.BlockSpec((tile_n, H, Wp), lambda n: (n, 0, 0))],
            out_specs=pl.BlockSpec((tile_n, Ho, Wp), lambda n: (n, 0, 0)),
        ),
        compiler_params=pltpu.CompilerParams(
            dimension_semantics=("parallel",),
            vmem_limit_bytes=32 * 1024 * 1024,
        ),
    )(x3)

    return out[:N, :, :Wo].reshape(N, 1, Ho, Wo)


def _reference(x):
    # Pure-JAX reference (valid cross-correlation with Sobel kernels).
    kx = jnp.array([[-1., 0., 1.], [-2., 0., 2.], [-1., 0., 1.]], jnp.float32)
    ky = jnp.array([[-1., -2., -1.], [0., 0., 0.], [1., 2., 1.]], jnp.float32)
    wx = kx[None, None]
    wy = ky[None, None]
    dn = jax.lax.conv_dimension_numbers(x.shape, wx.shape, ('NCHW', 'OIHW', 'NCHW'))
    gx = jax.lax.conv_general_dilated(x, wx, (1, 1), 'VALID', dimension_numbers=dn)
    gy = jax.lax.conv_general_dilated(x, wy, (1, 1), 'VALID', dimension_numbers=dn)
    return jnp.abs(gx) + jnp.abs(gy)


if __name__ == "__main__":
    key = jax.random.PRNGKey(0)
    N, C, H, W = 2, 1, 16, 16
    x = jax.random.normal(key, (N, C, H, W), dtype=jnp.float32)

    out = gradient_net(x)
    jax.block_until_ready(out)

    ref = _reference(x)
    assert out.shape == (N, 1, H - 2, W - 2), out.shape
    assert jnp.allclose(out, ref, atol=1e-5, rtol=1e-5), "mismatch vs reference"

    print("KERNEL_OK")
</pallas_src>

<mosaic_0001>
module attributes {stable_mosaic.version = 11 : i64} {
  func.func @_sobel_kernel(%arg0: i32, %arg1: memref<1x16x128xf32, #tpu.memory_space<vmem>>, %arg2: memref<1x14x128xf32, #tpu.memory_space<vmem>>) attributes {dimension_semantics = [#tpu.dimension_semantics<parallel>], iteration_bounds = array<i64: 2>, scalar_prefetch = 0 : i64, scratch_operands = 0 : i64, tpu.core_type = #tpu.core_type<tc>, window_params = [{transform_indices = @transform_0, window_bounds = array<i64: 1, 16, 128>}, {transform_indices = @transform_1, window_bounds = array<i64: 1, 14, 128>}]} {
    %c0 = arith.constant 0 : index
    %c0_0 = arith.constant 0 : index
    %c0_1 = arith.constant 0 : index
    %0 = vector.load %arg1[%c0, %c0_0, %c0_1] : memref<1x16x128xf32, #tpu.memory_space<vmem>>, vector<1x14x128xf32>
    %c0_2 = arith.constant 0 : index
    %c1 = arith.constant 1 : index
    %c0_3 = arith.constant 0 : index
    %1 = vector.load %arg1[%c0_2, %c1, %c0_3] : memref<1x16x128xf32, #tpu.memory_space<vmem>>, vector<1x14x128xf32>
    %c0_4 = arith.constant 0 : index
    %c2 = arith.constant 2 : index
    %c0_5 = arith.constant 0 : index
    %2 = vector.load %arg1[%c0_4, %c2, %c0_5] : memref<1x16x128xf32, #tpu.memory_space<vmem>>, vector<1x14x128xf32>
    %cst = arith.constant 2.000000e+00 : f32
    %3 = vector.broadcast %cst : f32 to vector<1x14x128xf32>
    %4 = arith.mulf %3, %1 : vector<1x14x128xf32>
    %5 = arith.addf %0, %4 : vector<1x14x128xf32>
    %6 = arith.addf %5, %2 : vector<1x14x128xf32>
    %7 = arith.subf %2, %0 : vector<1x14x128xf32>
    %c126_i32 = arith.constant 126 : i32
    %8 = tpu.dynamic_rotate %6 by %c126_i32 dim 2 : vector<1x14x128xf32>, i32 -> vector<1x14x128xf32>
    %c127_i32 = arith.constant 127 : i32
    %9 = tpu.dynamic_rotate %7 by %c127_i32 dim 2 : vector<1x14x128xf32>, i32 -> vector<1x14x128xf32>
    %c126_i32_6 = arith.constant 126 : i32
    %10 = tpu.dynamic_rotate %7 by %c126_i32_6 dim 2 : vector<1x14x128xf32>, i32 -> vector<1x14x128xf32>
    %11 = arith.subf %8, %6 : vector<1x14x128xf32>
    %cst_7 = arith.constant 2.000000e+00 : f32
    %12 = vector.broadcast %cst_7 : f32 to vector<1x14x128xf32>
    %13 = arith.mulf %12, %9 : vector<1x14x128xf32>
    %14 = arith.addf %7, %13 : vector<1x14x128xf32>
    %15 = arith.addf %14, %10 : vector<1x14x128xf32>
    %16 = math.absf %11 : vector<1x14x128xf32>
    %17 = math.absf %15 : vector<1x14x128xf32>
    %18 = arith.addf %16, %17 : vector<1x14x128xf32>
    %c0_8 = arith.constant 0 : index
    %c0_9 = arith.constant 0 : index
    %c0_10 = arith.constant 0 : index
    %19 = vector.load %arg2[%c0_8, %c0_9, %c0_10] : memref<1x14x128xf32, #tpu.memory_space<vmem>>, vector<1x14x128xf32>
    tpu.vector_store %arg2[%c0_8, %c0_9, %c0_10], %18 {strides = array<i32>} : memref<1x14x128xf32, #tpu.memory_space<vmem>>, vector<1x14x128xf32>,
    return
  }
  func.func @transform_0(%arg0: i32) -> (i32, i32, i32) {
    %c0_i32 = arith.constant 0 : i32
    %c0_i32_0 = arith.constant 0 : i32
    %c0_i32_1 = arith.constant 0 : i32
    return %arg0, %c0_i32, %c0_i32_0 : i32, i32, i32
  }
  func.func @transform_1(%arg0: i32) -> (i32, i32, i32) {
    %c0_i32 = arith.constant 0 : i32
    %c0_i32_0 = arith.constant 0 : i32
    %c0_i32_1 = arith.constant 0 : i32
    return %arg0, %c0_i32, %c0_i32_0 : i32, i32, i32
  }
}

</mosaic_0001>

<llo_original>
// kernel: tpu_custom_call.1
$region0: #{tpu_custom_call.1}
  #allocation0 [shape = 'u32[]', space=smem, size = 0x4, offset = 0x4, fixed_abs, tag = 'smem constant byte address 0x4 - core index']
  #allocation1 [shape = 'u32[144,128]{1,0:T(1,128)}', space=vmem, size = 0x12000, scoped, tag = 'internal scratch']
  %s0 = inlined_call_operand.hbm [shape: f32[2,16,128], index: 0, kind: input, shape index: {}]
  %s1 = inlined_call_operand.vmem [shape: f32[2,14,128], index: 1, kind: output, shape index: {}]
  %s2 = sld [smem:[#allocation0]]
  $region41: #{tpu_custom_call.1} parent=0
    _
  %s4 = ssub.s32 1, %s2
  %s5 = scalar_select 0, %s4, %s2
  $region1: #{tpu_custom_call.1} parent=0
    #allocation2 [shape = 'u8[16384]{0}', space=vmem, size = 0x4000, scoped, tag = 'input window, operand 0']
    #allocation3 [shape = 's32[2]{0}', space=sflag, size = 0x8, scoped, tag = 'scoped memory for tpu_custom_call.1']
    %6 = vsyncpa [#allocation3], 0
    %s7 = scalar_lea.sflag [#allocation3], 1
    %8 = vsyncpa %s7, 0
    loop: start=0, step=1, limit=4
    $region2: #{tpu_custom_call.1} parent=1 // loop_pre_header
      _
    $region3: #{tpu_custom_call.1} parent=1 // loop_header
      %s10 = sphi 0, %s14
      %p11 = scmp.ge.s32.totalorder %s10, 4
      %s20 = sphi 0, %s22
      %s23 = sphi 0, %s20
      %s24 = sphi 0, %s23
      %s40 = sphi 0, %s24
      %s46 = sphi 0, %s48
      %s49 = sphi 0, %s46
      %s50 = sphi 0, %s49
      %s66 = sphi 0, %s50
    $region4: #{tpu_custom_call.1} parent=1 // loop_header_branch
      %13 = sbr.rel (%p11) target = $region8
    $region5: #{tpu_custom_call.1} parent=1 // loop_body
      %s15 = ssub.s32 %s10, 1
      %s16 = ssub.s32 %s10, 2
      %s17 = sadd.s32 %s10, 1
      %s18 = ssub.s32 %s10, %s17
      %p19 = scmp.eq.s32.totalorder %s18, 0
      %s21 = sadd.s32 %s20, 1
      %s22 = scalar_select %p19, %s20, %s21
      %p25 = pneg %p19
      %p26 = scmp.eq.s32.totalorder %s10, 1
      %p27 = por %p25, %p26
      %p28 = scmp.ne.s32.totalorder %s20, %s23
      %p29 = scmp.eq.s32.totalorder %s10, 0
      %p30 = por %p28, %p29
      %p31 = scmp.ne.s32.totalorder %s20, %s23
      %p32 = scmp.eq.s32.totalorder %s15, 1
      %p33 = por %p31, %p32
      %p34 = scmp.ne.s32.totalorder %s23, %s24
      %p35 = scmp.eq.s32.totalorder %s15, 0
      %p36 = por %p34, %p35
      %p37 = scmp.ne.s32.totalorder %s23, %s24
      %p38 = scmp.eq.s32.totalorder %s16, 1
      %p39 = por %p37, %p38
      %p41 = scmp.ne.s32.totalorder %s24, %s40
      %p42 = scmp.eq.s32.totalorder %s16, 0
      %p43 = por %p41, %p42
      %s44 = ssub.s32 %s10, %s17
      %p45 = scmp.eq.s32.totalorder %s44, 0
      %s47 = sadd.s32 %s46, 1
      %s48 = scalar_select %p45, %s46, %s47
      %p51 = pneg %p45
      %p52 = scmp.eq.s32.totalorder %s10, 1
      %p53 = por %p51, %p52
      %p54 = scmp.ne.s32.totalorder %s46, %s49
      %p55 = scmp.eq.s32.totalorder %s10, 0
      %p56 = por %p54, %p55
      %p57 = scmp.ne.s32.totalorder %s46, %s49
      %p58 = scmp.eq.s32.totalorder %s15, 1
      %p59 = por %p57, %p58
      %p60 = scmp.ne.s32.totalorder %s49, %s50
      %p61 = scmp.eq.s32.totalorder %s15, 0
      %p62 = por %p60, %p61
      %p63 = scmp.ne.s32.totalorder %s49, %s50
      %p64 = scmp.eq.s32.totalorder %s16, 1
      %p65 = por %p63, %p64
      %p67 = scmp.ne.s32.totalorder %s50, %s66
      %p68 = scmp.eq.s32.totalorder %s16, 0
      %p69 = por %p67, %p68
      %p70 = scmp.le.s32.totalorder 1, %s10
      %p71 = scmp.lt.s32.totalorder %s10, 3
      %p72 = pnand %p70, %p71
      %p73 = pneg %p72
      // Predicated region
      $region9: #{tpu_custom_call.1} parent=5 // pred_check
        _
      $region10: #{tpu_custom_call.1} parent=5 // pred_check_branch
        %75 = sbr.rel (%p72) target = $region12
      $region11: #{tpu_custom_call.1} parent=5 // pred_region
        %s76 = ssub.s32 %s10, 1
      $region12: #{tpu_custom_call.1} parent=5 // pred_fallthru
        _
      %p77 = scmp.lt.s32.totalorder %s10, 2
      // Predicated region
      $region13: #{tpu_custom_call.1} parent=5 // pred_check
        %p78 = pneg %p77
      $region14: #{tpu_custom_call.1} parent=5 // pred_check_branch
        %80 = sbr.rel (%p78) target = $region16
      $region15: #{tpu_custom_call.1} parent=5 // pred_region
        // Predicated region
        $region17: #{tpu_custom_call.1} parent=15 // pred_check
          %p81 = pneg %p30
        $region18: #{tpu_custom_call.1} parent=15 // pred_check_branch
          %83 = sbr.rel (%p81) target = $region20
        $region19: #{tpu_custom_call.1} parent=15 // pred_region
          %s84 = sand.u32 %s20, 1
          %s85 = scalar_lea.sflag [#allocation3], %s84
          %s86 = sand.u32 %s20, 1
          %s87 = smul.addr %s86, 16
          %s88 = scalar_lea.vmem [#allocation2], %s87
          %s90 = ssub.s32 256, 256
          %91 = vsyncadd %s85, %s90
          %s92 = smul.addr %s10, 2
          %s93 = smul.addr %s92, 128
          %s94 = scalar_lea.hbm %s0, %s93
          %s95 = sshll.u32 %s88, 4
          %s96 = int_to_ptr.vmem [resolvable:$true] %s95
          %101 = dma.hbm_to_vmem [thread:$0]  %s94, 256, %s96, %s85, 128, 128, 8
        $region20: #{tpu_custom_call.1} parent=15 // pred_fallthru
          _
      $region16: #{tpu_custom_call.1} parent=5 // pred_fallthru
        _
      %p102 = scmp.le.s32.totalorder 1, %s10
      %p103 = scmp.lt.s32.totalorder %s10, 3
      %p104 = pnand %p102, %p103
      %p105 = pneg %p104
      // Predicated region
      $region21: #{tpu_custom_call.1} parent=5 // pred_check
        _
      $region22: #{tpu_custom_call.1} parent=5 // pred_check_branch
        %107 = sbr.rel (%p104) target = $region24
      $region23: #{tpu_custom_call.1} parent=5 // pred_region
        %s108 = ssub.s32 %s10, 1
        %s109 = sand.u32 %s23, 1
        %s110 = scalar_lea.sflag [#allocation3], %s109
        %s111 = sand.u32 %s23, 1
        %s112 = smul.addr %s111, 16
        %s113 = scalar_lea.vmem [#allocation2], %s112
        // Predicated region
        $region25: #{tpu_custom_call.1} parent=23 // pred_check
          %p114 = pneg %p36
        $region26: #{tpu_custom_call.1} parent=23 // pred_check_branch
          %116 = sbr.rel (%p114) target = $region28
        $region27: #{tpu_custom_call.1} parent=23 // pred_region
          %117 = dma.done %s110, 256
        $region28: #{tpu_custom_call.1} parent=23 // pred_fallthru
          _
        %s118 = sand.u32 %s23, 1
        %s119 = scalar_lea.sflag [#allocation3], %s118
        %s120 = sand.u32 %s23, 1
        %s121 = smul.addr %s120, 16
        %s122 = scalar_lea.vmem [#allocation2], %s121
        %p123 = pneg %p36
        %p124 = pneg %p33
        %p125 = pneg %p62
        %p126 = pneg %p59
        %p127 = scmp.lt.s32.totalorder %s15, 1
        %s128 = scalar_select %p127, %s15, 1
        %s129 = smul.addr %s128, 2
        %s130 = smul.addr %s129, 8
        %s131 = scalar_lea.vmem %s1, %s130
        %p132 = scmp.lt.s32.totalorder %s15, 1
        %s133 = scalar_select %p132, %s15, 1
        %s134 = smul.addr %s133, 2
        %s135 = smul.addr %s134, 8
        %s136 = scalar_lea.vmem %s1, %s135
        %v137 = vld [vmem:[%s113] sm:$0xff]
        %v138 = vld [vmem:[%s113 + $0x8] sm:$0x3f]
        %v139 = vld [vmem:[%s113 + $0x1] sm:$0xff]
        %v140 = vld [vmem:[%s113 + $0x9] sm:$0x3f]
        %v141 = vld [vmem:[%s113 + $0x2] sm:$0xff]
        %v142 = vld [vmem:[%s113 + $0xa] sm:$0x3f]
        %v143 = vmul.f32 %v139, 2.0
        %v144 = vmul.f32 %v140, 2.0
        %v145 = vadd.f32 %v137, %v143
        %v146 = vadd.f32 %v138, %v144
        %v147 = vadd.f32 %v145, %v141
        %v148 = vadd.f32 %v146, %v142
        %v149 = vsub.f32 %v141, %v137
        %v150 = vsub.f32 %v142, %v138
        %151 = vrot.lane.b32.xlu0 %v147, 126
        %v152 = vpop.permute.xlu0 %151
        %153 = vrot.lane.b32.xlu0 %v148, 126
        %v154 = vpop.permute.xlu0 %153
        %155 = vrot.lane.b32.xlu0 %v149, 127
        %v156 = vpop.permute.xlu0 %155
        %157 = vrot.lane.b32.xlu0 %v150, 127
        %v158 = vpop.permute.xlu0 %157
        %159 = vrot.lane.b32.xlu0 %v149, 126
        %v160 = vpop.permute.xlu0 %159
        %161 = vrot.lane.b32.xlu0 %v150, 126
        %v162 = vpop.permute.xlu0 %161
        %v163 = vsub.f32 %v152, %v147
        %v164 = vsub.f32 %v154, %v148
        %v165 = vmul.f32 %v156, 2.0
        %v166 = vmul.f32 %v158, 2.0
        %v167 = vadd.f32 %v149, %v165
        %v168 = vadd.f32 %v150, %v166
        %v169 = vadd.f32 %v167, %v160
        %v170 = vadd.f32 %v168, %v162
        %v171 = vand.u32 2147483647, %v163
        %v172 = vand.u32 2147483647, %v164
        %v173 = vand.u32 2147483647, %v169
        %v174 = vand.u32 2147483647, %v170
        %v175 = vadd.f32 %v171, %v173
        %v176 = vadd.f32 %v172, %v174
        %177 = vst [vmem:[%s136] sm:$0xff] %v175
        %178 = vst [vmem:[%s136 + $0x8] sm:$0x3f] %v176
        %p179 = scmp.lt.s32.totalorder %s15, 1
        %s180 = scalar_select %p179, %s15, 1
        %s181 = smul.addr %s180, 2
        %s182 = smul.addr %s181, 8
        %s183 = scalar_lea.vmem %s1, %s182
        // Predicated region
        $region29: #{tpu_custom_call.1} parent=23 // pred_check
          %p184 = pneg %p59
        $region30: #{tpu_custom_call.1} parent=23 // pred_check_branch
          %186 = sbr.rel (%p184) target = $region32
        $region31: #{tpu_custom_call.1} parent=23 // pred_region
          _
        $region32: #{tpu_custom_call.1} parent=23 // pred_fallthru
          _
      $region24: #{tpu_custom_call.1} parent=5 // pred_fallthru
        _
      %p187 = scmp.le.s32.totalorder 2, %s10
      // Predicated region
      $region33: #{tpu_custom_call.1} parent=5 // pred_check
        %p188 = pneg %p187
      $region34: #{tpu_custom_call.1} parent=5 // pred_check_branch
        %190 = sbr.rel (%p188) target = $region36
      $region35: #{tpu_custom_call.1} parent=5 // pred_region
        %s191 = ssub.s32 %s10, 2
        // Predicated region
        $region37: #{tpu_custom_call.1} parent=35 // pred_check
          %p192 = pneg %p65
        $region38: #{tpu_custom_call.1} parent=35 // pred_check_branch
          %194 = sbr.rel (%p192) target = $region40
        $region39: #{tpu_custom_call.1} parent=35 // pred_region
          %p195 = scmp.lt.s32.totalorder %s16, 1
          %s196 = scalar_select %p195, %s16, 1
          %s197 = smul.addr %s196, 2
          %s198 = smul.addr %s197, 8
          %s199 = scalar_lea.vmem %s1, %s198
        $region40: #{tpu_custom_call.1} parent=35 // pred_fallthru
          _
      $region36: #{tpu_custom_call.1} parent=5 // pred_fallthru
        _
    $region6: #{tpu_custom_call.1} parent=1 // loop_footer
      %s14 = sadd.s32 1, %s10
    $region7: #{tpu_custom_call.1} parent=1 // loop_footer_branch
      %9 = sbr.rel target = $region3
    $region8: #{tpu_custom_call.1} parent=1 // loop_exit
      _
    %200 = vsyncpa [#allocation3], 1
    %s201 = scalar_lea.sflag [#allocation3], 1
    %202 = vsyncpa %s201, 1

</llo_original>
